<compile_context>
chip_gen: v7x
topology: tpu7x:2x2x1
jax: 0.10.0
libtpu: 0.0.40
codegen_flags: <defaults>
</compile_context>

<pallas_src>
import jax
import jax.numpy as jnp
import numpy as np
from jax.experimental import pallas as pl
from jax.experimental.pallas import tpu as pltpu


def _round_up(a, b):
    return (a + b - 1) // b * b


def _conv2d_kernel(p_ref, w_ref, b_ref, o_ref, acc_ref):
    """One (oc_t, m_t) output tile, reduced over K tiles.

    p_ref   : (k_t, m_t)   bf16 im2col patch tile (K x fused N*OH*OW)
    w_ref   : (oc_t, k_t)  bf16 flattened-weight tile
    b_ref   : (oc_t, 1)    f32 bias column
    o_ref   : (oc_t, m_t)  output tile (lane-dense, multiple of 128 wide)
    acc_ref : (oc_t, m_t)  f32 accumulator scratch
    """
    k = pl.program_id(2)

    @pl.when(k == 0)
    def _():
        acc_ref[...] = jnp.zeros_like(acc_ref)

    acc_ref[...] += jnp.dot(
        w_ref[...], p_ref[...], preferred_element_type=jnp.float32
    )

    @pl.when(k == pl.num_programs(2) - 1)
    def _():
        o_ref[...] = (acc_ref[...] + b_ref[...]).astype(o_ref.dtype)


def conv2d_pallas(x, weight, bias, *, padding=(1, 1)):
    """2-D convolution, stride=1, dilation=1, groups=1 (NCHW, like nn.Conv2d)."""
    n, c, h, w_sp = x.shape
    oc, cin, kh, kw = weight.shape
    assert cin == c, "channel mismatch"
    ph, pw = padding
    hp, wp = h + 2 * ph, w_sp + 2 * pw
    oh, ow = hp - kh + 1, wp - kw + 1
    k_dim = c * kh * kw
    m_dim = oh * ow
    nm = n * m_dim

    # ---- tile sizes (padded so every grid cell is a full, aligned tile) ----
    oc_p = _round_up(oc, 8)
    oc_t = min(oc_p, 256)
    oc_p = _round_up(oc_p, oc_t)

    m_t = min(_round_up(nm, 128), 512)
    nm_p = _round_up(nm, m_t)

    k_t = min(_round_up(k_dim, 16), 512)
    k_p = _round_up(k_dim, k_t)

    # ---- wrapper-side layout plumbing (XLA, outside the kernel) ----
    xp = jnp.pad(x, ((0, 0), (0, 0), (ph, ph), (pw, pw)))
    # im2col: (N, C, KH*KW, OH, OW) -> (N, K, M).  Flattening order
    # (c slowest, then kh, then kw) matches weight.reshape(OC, C*KH*KW).
    patches = jnp.stack(
        [xp[:, :, i:i + oh, j:j + ow] for i in range(kh) for j in range(kw)],
        axis=2,
    ).reshape(n, k_dim, m_dim)
    # Fold batch into the lane axis: (K, N*M) — one big matmul problem.
    patches = patches.transpose(1, 0, 2).reshape(k_dim, nm)
    patches = jnp.pad(patches, ((0, k_p - k_dim), (0, nm_p - nm)))
    patches = patches.astype(jnp.bfloat16)

    w2d = jnp.pad(weight.reshape(oc, k_dim),
                  ((0, oc_p - oc), (0, k_p - k_dim))).astype(jnp.bfloat16)
    bcol = jnp.pad(bias.reshape(oc, 1), ((0, oc_p - oc), (0, 0)))
    bcol = bcol.astype(jnp.float32)

    grid = (oc_p // oc_t, nm_p // m_t, k_p // k_t)

    flops = 2 * oc_p * k_p * nm_p
    bytes_accessed = (2 * patches.size + 2 * w2d.size
                      + 4 * bcol.size + 4 * oc_p * nm_p)

    # VMEM budget: double-buffered input tiles + double-buffered output tile
    # + f32 accumulator (plus generous headroom, still far below all scoped
    # defaults for these tile sizes).
    tile_bytes = (2 * (k_t * m_t * 2) + 2 * (oc_t * k_t * 2) + 2 * (oc_t * 4)
                  + 2 * (oc_t * m_t * 4) + oc_t * m_t * 4)
    vmem_limit = min(max(4 * tile_bytes, 16 * 1024 * 1024), 48 * 1024 * 1024)

    out_flat = pl.pallas_call(
        _conv2d_kernel,
        out_shape=jax.ShapeDtypeStruct((oc_p, nm_p), x.dtype),
        grid_spec=pltpu.PrefetchScalarGridSpec(
            num_scalar_prefetch=0,
            grid=grid,
            in_specs=[
                # im2col patches: (K, N*M) tiled over (k, m)
                pl.BlockSpec((k_t, m_t), lambda i, j, k: (k, j)),
                # flattened weights: (OC, K) tiled over (oc, k)
                pl.BlockSpec((oc_t, k_t), lambda i, j, k: (i, k)),
                # bias column: (OC, 1) tiled over oc
                pl.BlockSpec((oc_t, 1), lambda i, j, k: (i, 0)),
            ],
            out_specs=pl.BlockSpec((oc_t, m_t), lambda i, j, k: (i, j)),
            scratch_shapes=[pltpu.VMEM((oc_t, m_t), jnp.float32)],
        ),
        compiler_params=pltpu.CompilerParams(
            dimension_semantics=("parallel", "parallel", "arbitrary"),
            vmem_limit_bytes=vmem_limit,
        ),
        cost_estimate=pl.CostEstimate(
            flops=flops, transcendentals=0, bytes_accessed=bytes_accessed),
    )(patches, w2d, bcol)

    # Un-pad and fold back to NCHW.
    out = out_flat[:oc, :nm].reshape(oc, n, oh, ow).transpose(1, 0, 2, 3)
    return out


if __name__ == "__main__":
    # Small, deterministic shapes: batch=2, C_in=4, 16x16 spatial, C_out=8, 3x3 kernel.
    N, C, H, W = 2, 4, 16, 16
    OC, KH, KW = 8, 3, 3

    key = jax.random.PRNGKey(0)
    kx, kw_, kb = jax.random.split(key, 3)
    x = jax.random.normal(kx, (N, C, H, W), dtype=jnp.float32)
    weight = jax.random.normal(kw_, (OC, C, KH, KW), dtype=jnp.float32) * 0.1
    bias = jax.random.normal(kb, (OC,), dtype=jnp.float32) * 0.1

    out = conv2d_pallas(x, weight, bias, padding=(1, 1))
    out = jax.block_until_ready(out)

    # Reference check against XLA's convolution (same NCHW / OIHW convention).
    # Tolerance loosened vs. the pure-f32 version because the kernel feeds the
    # MXU bf16 operands (f32 accumulation).
    ref = jax.lax.conv_general_dilated(
        x, weight, window_strides=(1, 1), padding=((1, 1), (1, 1)),
        dimension_numbers=("NCHW", "OIHW", "NCHW"),
    ) + bias.reshape(1, OC, 1, 1)
    ref = jax.block_until_ready(ref)

    assert out.shape == (N, OC, H, W), out.shape
    np.testing.assert_allclose(np.asarray(out), np.asarray(ref),
                               atol=2e-2, rtol=2e-2)

    print("KERNEL_OK")
</pallas_src>

<mosaic_0001>
module attributes {stable_mosaic.version = 11 : i64} {
  func.func @_conv2d_kernel(%arg0: i32, %arg1: i32, %arg2: i32, %arg3: memref<48x512xbf16, #tpu.memory_space<vmem>>, %arg4: memref<8x48xbf16, #tpu.memory_space<vmem>>, %arg5: memref<8x1xf32, #tpu.memory_space<vmem>>, %arg6: memref<8x512xf32, #tpu.memory_space<vmem>>, %arg7: memref<8x512xf32, #tpu.memory_space<vmem>>) attributes {dimension_semantics = [#tpu.dimension_semantics<parallel>, #tpu.dimension_semantics<parallel>, #tpu.dimension_semantics<arbitrary>], iteration_bounds = array<i64: 1, 1, 1>, scalar_prefetch = 0 : i64, scratch_operands = 1 : i64, tpu.core_type = #tpu.core_type<tc>, window_params = [{transform_indices = @transform_0, window_bounds = array<i64: 48, 512>}, {transform_indices = @transform_1, window_bounds = array<i64: 8, 48>}, {transform_indices = @transform_2, window_bounds = array<i64: 8, 1>}, {transform_indices = @transform_3, window_bounds = array<i64: 8, 512>}]} {
    %c0_i32 = arith.constant 0 : i32
    %0 = arith.cmpi eq, %arg2, %c0_i32 : i32
    %1 = arith.extui %0 : i1 to i32
    %c0_i32_0 = arith.constant 0 : i32
    %2 = arith.cmpi ne, %1, %c0_i32_0 : i32
    scf.if %2 {
      %cst_10 = arith.constant 0.000000e+00 : f32
      %12 = vector.broadcast %cst_10 : f32 to vector<8x512xf32>
      %c0_11 = arith.constant 0 : index
      %c0_12 = arith.constant 0 : index
      %13 = vector.load %arg7[%c0_11, %c0_12] : memref<8x512xf32, #tpu.memory_space<vmem>>, vector<8x512xf32>
      tpu.vector_store %arg7[%c0_11, %c0_12], %12 {strides = array<i32>} : memref<8x512xf32, #tpu.memory_space<vmem>>, vector<8x512xf32>,
    } else {
    }
    %c0 = arith.constant 0 : index
    %c0_1 = arith.constant 0 : index
    %3 = vector.load %arg7[%c0, %c0_1] : memref<8x512xf32, #tpu.memory_space<vmem>>, vector<8x512xf32>
    %c0_2 = arith.constant 0 : index
    %c0_3 = arith.constant 0 : index
    %4 = vector.load %arg4[%c0_2, %c0_3] : memref<8x48xbf16, #tpu.memory_space<vmem>>, vector<8x48xbf16>
    %c0_4 = arith.constant 0 : index
    %c0_5 = arith.constant 0 : index
    %5 = vector.load %arg3[%c0_4, %c0_5] : memref<48x512xbf16, #tpu.memory_space<vmem>>, vector<48x512xbf16>
    %cst = arith.constant dense<0.000000e+00> : vector<8x512xf32>
    %6 = tpu.matmul %4, %5, %cst {dimension_numbers = #tpu.dot_dimension_numbers<[1], [0], [0], [1], [0, 0, 1, 1], [], []>} : vector<8x48xbf16>, vector<48x512xbf16>, vector<8x512xf32> -> vector<8x512xf32>
    %7 = arith.addf %3, %6 : vector<8x512xf32>
    %c0_6 = arith.constant 0 : index
    %c0_7 = arith.constant 0 : index
    %8 = vector.load %arg7[%c0_6, %c0_7] : memref<8x512xf32, #tpu.memory_space<vmem>>, vector<8x512xf32>
    tpu.vector_store %arg7[%c0_6, %c0_7], %7 {strides = array<i32>} : memref<8x512xf32, #tpu.memory_space<vmem>>, vector<8x512xf32>,
    %c0_i32_8 = arith.constant 0 : i32
    %9 = arith.cmpi eq, %arg2, %c0_i32_8 : i32
    %10 = arith.extui %9 : i1 to i32
    %c0_i32_9 = arith.constant 0 : i32
    %11 = arith.cmpi ne, %10, %c0_i32_9 : i32
    scf.if %11 {
      %c0_10 = arith.constant 0 : index
      %c0_11 = arith.constant 0 : index
      %12 = vector.load %arg7[%c0_10, %c0_11] : memref<8x512xf32, #tpu.memory_space<vmem>>, vector<8x512xf32>
      %c0_12 = arith.constant 0 : index
      %c0_13 = arith.constant 0 : index
      %13 = vector.load %arg5[%c0_12, %c0_13] : memref<8x1xf32, #tpu.memory_space<vmem>>, vector<8x1xf32>
      %14 = vector.broadcast %13 : vector<8x1xf32> to vector<8x512xf32>
      %15 = arith.addf %12, %14 : vector<8x512xf32>
      %c0_14 = arith.constant 0 : index
      %c0_15 = arith.constant 0 : index
      %16 = vector.load %arg6[%c0_14, %c0_15] : memref<8x512xf32, #tpu.memory_space<vmem>>, vector<8x512xf32>
      tpu.vector_store %arg6[%c0_14, %c0_15], %15 {strides = array<i32>} : memref<8x512xf32, #tpu.memory_space<vmem>>, vector<8x512xf32>,
    } else {
    }
    return
  }
  func.func @transform_0(%arg0: i32, %arg1: i32, %arg2: i32) -> (i32, i32) {
    %c0_i32 = arith.constant 0 : i32
    return %arg2, %arg1 : i32, i32
  }
  func.func @transform_1(%arg0: i32, %arg1: i32, %arg2: i32) -> (i32, i32) {
    %c0_i32 = arith.constant 0 : i32
    return %arg0, %arg2 : i32, i32
  }
  func.func @transform_2(%arg0: i32, %arg1: i32, %arg2: i32) -> (i32, i32) {
    %c0_i32 = arith.constant 0 : i32
    %c0_i32_0 = arith.constant 0 : i32
    return %arg0, %c0_i32 : i32, i32
  }
  func.func @transform_3(%arg0: i32, %arg1: i32, %arg2: i32) -> (i32, i32) {
    %c0_i32 = arith.constant 0 : i32
    return %arg0, %arg1 : i32, i32
  }
}

</mosaic_0001>

<llo_original>
// kernel: tpu_custom_call.1
$region0: #{tpu_custom_call.1}
  #allocation0 [shape = 'u32[]', space=smem, size = 0x4, offset = 0x4, fixed_abs, tag = 'smem constant byte address 0x4 - core index']
  #allocation1 [shape = 'u32[144,128]{1,0:T(1,128)}', space=vmem, size = 0x12000, scoped, tag = 'internal scratch']
  #allocation2 [shape = 'f32[8,512]{1,0:T(8,128)}', space=vmem, size = 0x4000, scoped, tag = 'scratch operand']
  %s0 = inlined_call_operand.hbm [shape: bf16[48,512], index: 0, kind: input, shape index: {}]
  %s1 = inlined_call_operand.vmem [shape: bf16[8,48], index: 1, kind: input, shape index: {}]
  %s2 = inlined_call_operand.vmem [shape: f32[8,1], index: 2, kind: input, shape index: {}]
  %s3 = inlined_call_operand.hbm [shape: f32[8,512], index: 3, kind: output, shape index: {}]
  %s4 = sld [smem:[#allocation0]]
  $region34: #{tpu_custom_call.1} parent=0
    _
  %s6 = ssub.s32 1, %s4
  %s7 = scalar_select 0, %s6, %s4
  $region1: #{tpu_custom_call.1} parent=0
    #allocation3 [shape = 'u8[49152]{0}', space=vmem, size = 0xc000, scoped, tag = 'input window, operand 0, single buffered']
    #allocation4 [shape = 's32[1]{0}', space=sflag, size = 0x4, scoped, tag = 'scoped memory for tpu_custom_call.1']
    #allocation5 [shape = 's32[1]{0}', space=sflag, size = 0x4, scoped, tag = 'scoped memory for tpu_custom_call.1']
    #allocation6 [shape = 'u8[16384]{0}', space=vmem, size = 0x4000, scoped, tag = 'output window, operand 0, single buffered']
    %8 = vsyncpa [#allocation4], 0
    %9 = vsyncpa [#allocation5], 0
    // Predicated region
    $region2: #{tpu_custom_call.1} parent=1 // pred_check
      _
    $region3: #{tpu_custom_call.1} parent=1 // pred_check_branch
      %11 = sbr.rel (0) target = $region5
    $region4: #{tpu_custom_call.1} parent=1 // pred_region
      %s13 = ssub.s32 1536, 1536
      %14 = vsyncadd [#allocation4], %s13
      %s15 = sshll.u32 [#allocation3], 4
      %s16 = int_to_ptr.vmem [resolvable:$true] %s15
      %21 = dma.hbm_to_vmem [thread:$0]  %s0, 1536, %s16, [#allocation4], 256, 256, 16
    $region5: #{tpu_custom_call.1} parent=1 // pred_fallthru
      _
    // Predicated region
    $region6: #{tpu_custom_call.1} parent=1 // pred_check
      _
    $region7: #{tpu_custom_call.1} parent=1 // pred_check_branch
      %23 = sbr.rel (0) target = $region9
    $region8: #{tpu_custom_call.1} parent=1 // pred_region
      _
    $region9: #{tpu_custom_call.1} parent=1 // pred_fallthru
      _
    // Predicated region
    $region10: #{tpu_custom_call.1} parent=1 // pred_check
      _
    $region11: #{tpu_custom_call.1} parent=1 // pred_check_branch
      %25 = sbr.rel (0) target = $region13
    $region12: #{tpu_custom_call.1} parent=1 // pred_region
      _
    $region13: #{tpu_custom_call.1} parent=1 // pred_fallthru
      _
    // Predicated region
    $region14: #{tpu_custom_call.1} parent=1 // pred_check
      _
    $region15: #{tpu_custom_call.1} parent=1 // pred_check_branch
      %27 = sbr.rel (0) target = $region17
    $region16: #{tpu_custom_call.1} parent=1 // pred_region
      %28 = dma.done [#allocation4], 1536
    $region17: #{tpu_custom_call.1} parent=1 // pred_fallthru
      _
    %p30 = scmp.eq.s32.totalorder 0, 0
    // Predicated region
    $region18: #{tpu_custom_call.1} parent=1 // pred_check
      %p31 = pneg %p30
    $region19: #{tpu_custom_call.1} parent=1 // pred_check_branch
      %33 = sbr.rel (%p31) target = $region21
    $region20: #{tpu_custom_call.1} parent=1 // pred_region
      %34 = vst [vmem:[#allocation2] sm:$0xff] 0.0
      %35 = vst [vmem:[#allocation2 + $0x8] sm:$0xff] 0.0
      %36 = vst [vmem:[#allocation2 + $0x10] sm:$0xff] 0.0
      %37 = vst [vmem:[#allocation2 + $0x18] sm:$0xff] 0.0
    $region21: #{tpu_custom_call.1} parent=1 // pred_fallthru
      _
    %v38 = vld [vmem:[#allocation2] sm:$0xff]
    %v39 = vld [vmem:[#allocation2 + $0x8] sm:$0xff]
    %v40 = vld [vmem:[#allocation2 + $0x10] sm:$0xff]
    %v41 = vld [vmem:[#allocation2 + $0x18] sm:$0xff]
    %v42 = vld [vmem:[%s1] sm:$0xf]
    %v43 = vld [vmem:[#allocation3] sm:$0xff]
    %v44 = vld [vmem:[#allocation3 + $0x8] sm:$0xff]
    %v45 = vld [vmem:[#allocation3 + $0x10] sm:$0xff]
    %v46 = vld [vmem:[#allocation3 + $0x18] sm:$0xff]
    %v47 = vld [vmem:[#allocation3 + $0x20] sm:$0xff]
    %v48 = vld [vmem:[#allocation3 + $0x28] sm:$0xff]
    %v49 = vld [vmem:[#allocation3 + $0x30] sm:$0xff]
    %v50 = vld [vmem:[#allocation3 + $0x38] sm:$0xff]
    %v51 = vld [vmem:[#allocation3 + $0x40] sm:$0xff]
    %v52 = vld [vmem:[#allocation3 + $0x48] sm:$0xff]
    %v53 = vld [vmem:[#allocation3 + $0x50] sm:$0xff]
    %v54 = vld [vmem:[#allocation3 + $0x58] sm:$0xff]
    %v67 = vunpack.c.l.b16 %v43
    %v68 = vunpack.c.h.b16 %v43
    %v69 = vunpack.c.l.b16 %v44
    %v70 = vunpack.c.h.b16 %v44
    %v71 = vunpack.c.l.b16 %v45
    %v72 = vunpack.c.h.b16 %v45
    %v73 = vunpack.c.l.b16 %v46
    %v74 = vunpack.c.h.b16 %v46
    %v75 = vunpack.c.l.b16 %v47
    %v76 = vunpack.c.h.b16 %v47
    %v77 = vunpack.c.l.b16 %v48
    %v78 = vunpack.c.h.b16 %v48
    %v79 = vunpack.c.l.b16 %v49
    %v80 = vunpack.c.h.b16 %v49
    %v81 = vunpack.c.l.b16 %v50
    %v82 = vunpack.c.h.b16 %v50
    %v83 = vunpack.c.l.b16 %v51
    %v84 = vunpack.c.h.b16 %v51
    %v85 = vunpack.c.l.b16 %v52
    %v86 = vunpack.c.h.b16 %v52
    %v87 = vunpack.c.l.b16 %v53
    %v88 = vunpack.c.h.b16 %v53
    %v89 = vunpack.c.l.b16 %v54
    %v90 = vunpack.c.h.b16 %v54
    %v91 = vpack.c.b16 %v71, %v67
    %v92 = vpack.c.b16 %v72, %v68
    %v93 = vpack.c.b16 %v73, %v69
    %v94 = vpack.c.b16 %v74, %v70
    %v95 = vpack.c.b16 %v79, %v75
    %v96 = vpack.c.b16 %v80, %v76
    %v97 = vpack.c.b16 %v81, %v77
    %v98 = vpack.c.b16 %v82, %v78
    %v99 = vpack.c.b16 %v87, %v83
    %v100 = vpack.c.b16 %v88, %v84
    %v101 = vpack.c.b16 %v89, %v85
    %v102 = vpack.c.b16 %v90, %v86
    %vm115 = vcmask 392192
    %v117 = vsel %vm115, %v42, 0
    %119 = vmatprep.subr.bf16.mxu0 %v92
    %120 = vmatpush1.bf16.msra.mxu0 %v91
    %121 = vmatprep.subr.bf16.mxu0 %v96
    %122 = vmatpush1.bf16.msra.mxu0 %v95
    %123 = vmatprep.subr.bf16.mxu0 %v100
    %124 = vmatpush1.bf16.msra.mxu0 %v99
    %125 = vmatprep.subr.bf16.mxu0 0
    %126 = vmatpush1.bf16.msra.mxu0 0
    %127 = vmatprep.subr.bf16.mxu0 0
    %128 = vmatpush1.bf16.msra.mxu0 0
    %129 = vmatprep.subr.bf16.mxu0 0
    %130 = vmatpush1.bf16.msra.mxu0 0
    %131 = vmatprep.subr.bf16.mxu0 0
    %132 = vmatpush1.bf16.msra.mxu0 0
    %133 = vmatprep.subr.bf16.mxu0 0
    %134 = vmatpush1.bf16.msra.mxu0 0
    %135 = vmatprep.subr.bf16.mxu0 0
    %136 = vmatpush1.bf16.msra.mxu0 0
    %137 = vmatprep.subr.bf16.mxu0 0
    %138 = vmatpush1.bf16.msra.mxu0 0
    %139 = vmatprep.subr.bf16.mxu0 0
    %140 = vmatpush1.bf16.msra.mxu0 0
    %141 = vmatprep.subr.bf16.mxu0 0
    %142 = vmatpush1.bf16.msra.mxu0 0
    %143 = vmatprep.subr.bf16.mxu0 0
    %144 = vmatpush1.bf16.msra.mxu0 0
    %145 = vmatprep.subr.bf16.mxu0 0
    %146 = vmatpush1.bf16.msra.mxu0 0
    %147 = vmatprep.subr.bf16.mxu0 0
    %148 = vmatpush1.bf16.msra.mxu0 0
    %149 = vmatprep.subr.bf16.mxu0 0
    %150 = vmatpush1.bf16.msra.mxu0 0
    %151 = vmatprep.mubr.bf16.mxu0 0
    %152 = vmatmul.mubr.bf16.gmra.mrb[0].mxu0 %v117
    %v153 = vpop.f32.mrb[0].mxu0
    %v154 = vadd.f32 0.0, %v153
    %v155 = vpop.f32.mrb[0].mxu0
    %v156 = vadd.f32 0.0, %v155
    %v157 = vpop.f32.mrb[0].mxu0
    %v158 = vpop.f32.mrb[0].mxu0
    %159 = vdwg.mxu0
    %160 = vmatprep.subr.bf16.mxu0 %v94
    %161 = vmatpush1.bf16.msra.mxu0 %v93
    %162 = vmatprep.subr.bf16.mxu0 %v98
    %163 = vmatpush1.bf16.msra.mxu0 %v97
    %164 = vmatprep.subr.bf16.mxu0 %v102
    %165 = vmatpush1.bf16.msra.mxu0 %v101
    %166 = vmatprep.subr.bf16.mxu0 0
    %167 = vmatpush1.bf16.msra.mxu0 0
    %168 = vmatprep.subr.bf16.mxu0 0
    %169 = vmatpush1.bf16.msra.mxu0 0
    %170 = vmatprep.subr.bf16.mxu0 0
    %171 = vmatpush1.bf16.msra.mxu0 0
    %172 = vmatprep.subr.bf16.mxu0 0
    %173 = vmatpush1.bf16.msra.mxu0 0
    %174 = vmatprep.subr.bf16.mxu0 0
    %175 = vmatpush1.bf16.msra.mxu0 0
    %176 = vmatprep.subr.bf16.mxu0 0
    %177 = vmatpush1.bf16.msra.mxu0 0
    %178 = vmatprep.subr.bf16.mxu0 0
    %179 = vmatpush1.bf16.msra.mxu0 0
    %180 = vmatprep.subr.bf16.mxu0 0
    %181 = vmatpush1.bf16.msra.mxu0 0
    %182 = vmatprep.subr.bf16.mxu0 0
    %183 = vmatpush1.bf16.msra.mxu0 0
    %184 = vmatprep.subr.bf16.mxu0 0
    %185 = vmatpush1.bf16.msra.mxu0 0
    %186 = vmatprep.subr.bf16.mxu0 0
    %187 = vmatpush1.bf16.msra.mxu0 0
    %188 = vmatprep.subr.bf16.mxu0 0
    %189 = vmatpush1.bf16.msra.mxu0 0
    %190 = vmatprep.subr.bf16.mxu0 0
    %191 = vmatpush1.bf16.msra.mxu0 0
    %192 = vmatprep.mubr.bf16.mxu0 0
    %193 = vmatmul.mubr.bf16.gmra.mrb[0].mxu0 %v117
    %v194 = vpop.f32.mrb[0].mxu0
    %v195 = vadd.f32 0.0, %v194
    %v196 = vpop.f32.mrb[0].mxu0
    %v197 = vadd.f32 0.0, %v196
    %v198 = vpop.f32.mrb[0].mxu0
    %v199 = vpop.f32.mrb[0].mxu0
    %200 = vdwg.mxu0
    %v201 = vadd.f32 %v38, %v154
    %v202 = vadd.f32 %v39, %v156
    %v203 = vadd.f32 %v40, %v195
    %v204 = vadd.f32 %v41, %v197
    %205 = vst [vmem:[#allocation2] sm:$0xff] %v201
    %206 = vst [vmem:[#allocation2 + $0x8] sm:$0xff] %v202
    %207 = vst [vmem:[#allocation2 + $0x10] sm:$0xff] %v203
    %208 = vst [vmem:[#allocation2 + $0x18] sm:$0xff] %v204
    // Predicated region
    $region22: #{tpu_custom_call.1} parent=1 // pred_check
      %p209 = pneg %p30
    $region23: #{tpu_custom_call.1} parent=1 // pred_check_branch
      %211 = sbr.rel (%p209) target = $region25
    $region24: #{tpu_custom_call.1} parent=1 // pred_region
      %v212 = vld [vmem:[#allocation2] sm:$0xff]
      %v213 = vld [vmem:[#allocation2 + $0x8] sm:$0xff]
      %v214 = vld [vmem:[#allocation2 + $0x10] sm:$0xff]
      %v215 = vld [vmem:[#allocation2 + $0x18] sm:$0xff]
      %v216 = vld [vmem:[%s2] sm:$0xff]
      %218 = vset.pattern.permute.xlu0 0
      %219 = vperm.xlu0 %218, %v216
      %v220 = vpop.permute.xlu0 %219
      %v222 = vadd.f32 %v212, %v220
      %v223 = vadd.f32 %v213, %v220
      %v224 = vadd.f32 %v214, %v220
      %v225 = vadd.f32 %v215, %v220
      %226 = vst [vmem:[#allocation6] sm:$0xff] %v222
      %227 = vst [vmem:[#allocation6 + $0x8] sm:$0xff] %v223
      %228 = vst [vmem:[#allocation6 + $0x10] sm:$0xff] %v224
      %229 = vst [vmem:[#allocation6 + $0x18] sm:$0xff] %v225
    $region25: #{tpu_custom_call.1} parent=1 // pred_fallthru
      _
    // Predicated region
    $region26: #{tpu_custom_call.1} parent=1 // pred_check
      _
    $region27: #{tpu_custom_call.1} parent=1 // pred_check_branch
      %231 = sbr.rel (0) target = $region29
    $region28: #{tpu_custom_call.1} parent=1 // pred_region
      %s233 = ssub.s32 512, 512
      %234 = vsyncadd [#allocation5], %s233
      %s236 = sshll.u32 [#allocation6], 4
      %s237 = int_to_ptr.vmem [resolvable:$true] %s236
      %239 = dma.vmem_to_hbm [thread:$0]  %s237, 512, %s3, [#allocation5]
    $region29: #{tpu_custom_call.1} parent=1 // pred_fallthru
      _
    // Predicated region
    $region30: #{tpu_custom_call.1} parent=1 // pred_check
      _
    $region31: #{tpu_custom_call.1} parent=1 // pred_check_branch
      %241 = sbr.rel (0) target = $region33
    $region32: #{tpu_custom_call.1} parent=1 // pred_region
      %242 = dma.done [#allocation5], 512
    $region33: #{tpu_custom_call.1} parent=1 // pred_fallthru
      _
    %243 = vsyncpa [#allocation4], 1
    %244 = vsyncpa [#allocation5], 1

</llo_original>
